<compile_context>
chip_gen: v6e
topology: v6e:2x2x1
jax: 0.10.0
libtpu: 0.0.40
codegen_flags: <defaults>
</compile_context>

<pallas_src>
import jax
import jax.numpy as jnp
from jax.experimental import pallas as pl
from jax.experimental.pallas import tpu as pltpu


def _make_accuracy_kernel(n_total: int, tile_rows: int):
    def kernel(preds_ref, targets_ref, out_ref, count_ref):
        i = pl.program_id(0)

        @pl.when(i == 0)
        def _init():
            count_ref[0] = jnp.int32(0)

        # Native-dtype tile from HBM; cast to f32 in-kernel (VPU, hidden under DMA).
        preds = preds_ref[...].astype(jnp.float32)   # (TR, C)
        targets = targets_ref[...]                   # (TR, 1) int32
        tr, c = preds.shape

        # Row-wise argmax with first-occurrence (torch.argmax) tie semantics.
        max_val = jnp.max(preds, axis=1, keepdims=True)                 # (TR, 1)
        col_ids = jax.lax.broadcasted_iota(jnp.int32, (tr, c), 1)       # (TR, C)
        masked_ids = jnp.where(preds == max_val, col_ids, jnp.int32(c))
        pred_cls = jnp.min(masked_ids, axis=1, keepdims=True)           # (TR, 1)

        # Mask rows beyond the true N (partial last tile reads padded/garbage rows).
        row_ids = jax.lax.broadcasted_iota(jnp.int32, (tr, 1), 0) + i * tile_rows
        valid = row_ids < n_total
        match = jnp.logical_and(valid, pred_cls == targets)

        count_ref[0] = count_ref[0] + jnp.sum(match.astype(jnp.int32))

        @pl.when(i == pl.num_programs(0) - 1)
        def _finalize():
            # torch.true_divide(correct, N) -> float; divide once by the TRUE N.
            out_ref[0, 0] = count_ref[0].astype(jnp.float32) / jnp.float32(n_total)

    return kernel


# Per-buffer budget; double-buffered footprint stays <= ~16 MiB on every generation.
_PER_BUFFER_BYTES = 8 * 1024 * 1024


def _pick_tile_rows(n: int, c: int, itemsize: int) -> int:
    bytes_per_row = c * itemsize + 4          # one preds row + one int32 target
    tr = _PER_BUFFER_BYTES // (2 * bytes_per_row)
    tr = min(4096, max(8, tr))
    tr = (tr // 8) * 8                        # sublane alignment
    if tr >= n:
        return n                              # full-extent block always legal
    return tr


def accuracy(preds: jax.Array, targets: jax.Array, *, tile_rows: int | None = None) -> jax.Array:
    """preds: (N, C) float (any dtype), targets: (N,) int. Returns scalar f32 accuracy."""
    n, c = preds.shape
    targets2d = targets.astype(jnp.int32).reshape(n, 1)

    itemsize = jnp.dtype(preds.dtype).itemsize
    if tile_rows is None:
        tile_rows = _pick_tile_rows(n, c, itemsize)
    else:
        tile_rows = min(tile_rows, n)
        if tile_rows < n:
            tile_rows = max(8, (tile_rows // 8) * 8)

    grid = (pl.cdiv(n, tile_rows),)
    kernel = _make_accuracy_kernel(n, tile_rows)

    cost = pl.CostEstimate(
        flops=2 * n * c,
        transcendentals=0,
        bytes_accessed=n * c * itemsize + n * 4 + 4,
    )

    out = pl.pallas_call(
        kernel,
        out_shape=jax.ShapeDtypeStruct((1, 1), jnp.float32),
        grid=grid,
        in_specs=[
            pl.BlockSpec((tile_rows, c), lambda i: (i, 0)),   # preds tile (native dtype)
            pl.BlockSpec((tile_rows, 1), lambda i: (i, 0)),   # targets tile
        ],
        out_specs=pl.BlockSpec(memory_space=pltpu.SMEM),      # (1,1) f32 scalar result
        scratch_shapes=[pltpu.SMEM((1,), jnp.int32)],         # running correct-count
        compiler_params=pltpu.CompilerParams(
            dimension_semantics=("arbitrary",),               # accumulating grid axis
            vmem_limit_bytes=32 * 1024 * 1024,
        ),
        cost_estimate=cost,
    )(preds, targets2d)
    return out[0, 0]


def _reference(preds, targets):
    return jnp.mean(
        (jnp.argmax(preds, axis=1).astype(jnp.int32) == targets.astype(jnp.int32)).astype(jnp.float32)
    )


if __name__ == "__main__":
    num_classes = 32
    batch = 8

    key = jax.random.PRNGKey(0)
    k1, k2, k3, k4 = jax.random.split(key, 4)

    # Primary small case (matches module's implied shapes).
    preds = jax.random.normal(k1, (batch, num_classes), dtype=jnp.float32)
    targets = jax.random.randint(k2, (batch,), 0, num_classes, dtype=jnp.int32)

    acc = accuracy(preds, targets)
    acc = jax.block_until_ready(acc)
    ref = _reference(preds, targets)
    assert jnp.allclose(acc, ref), (acc, ref)

    # Secondary case exercising the multi-tile grid + tail-row masking path.
    n2 = 300
    preds2 = jax.random.normal(k3, (n2, num_classes), dtype=jnp.float32)
    targets2 = jax.random.randint(k4, (n2,), 0, num_classes, dtype=jnp.int32)

    acc2 = accuracy(preds2, targets2, tile_rows=128)   # grid=3, last tile partial
    acc2 = jax.block_until_ready(acc2)
    ref2 = _reference(preds2, targets2)
    assert jnp.allclose(acc2, ref2), (acc2, ref2)

    print("KERNEL_OK")
</pallas_src>

<mosaic_0001>
module attributes {stable_mosaic.version = 11 : i64} {
  func.func @kernel(%arg0: i32, %arg1: memref<8x32xf32, #tpu.memory_space<vmem>>, %arg2: memref<8x1xi32, #tpu.memory_space<vmem>>, %arg3: memref<1x1xf32, #tpu.memory_space<smem>>, %arg4: memref<1xi32, #tpu.memory_space<smem>>) attributes {dimension_semantics = [#tpu.dimension_semantics<arbitrary>], iteration_bounds = array<i64: 1>, scalar_prefetch = 0 : i64, scratch_operands = 1 : i64, tpu.core_type = #tpu.core_type<tc>, window_params = [{transform_indices = @transform_0, window_bounds = array<i64: 8, 32>}, {transform_indices = @transform_1, window_bounds = array<i64: 8, 1>}, {transform_indices = @transform_2, window_bounds = array<i64: 1, 1>}]} {
    %c0_i32 = arith.constant 0 : i32
    %0 = arith.cmpi eq, %arg0, %c0_i32 : i32
    %1 = arith.extui %0 : i1 to i32
    %c0_i32_0 = arith.constant 0 : i32
    %2 = arith.cmpi ne, %1, %c0_i32_0 : i32
    scf.if %2 {
      %c0_i32_11 = arith.constant 0 : i32
      %c0_12 = arith.constant 0 : index
      %33 = memref.load %arg4[%c0_12] : memref<1xi32, #tpu.memory_space<smem>>
      memref.store %c0_i32_11, %arg4[%c0_12] : memref<1xi32, #tpu.memory_space<smem>>
    } else {
    }
    %c0 = arith.constant 0 : index
    %c0_1 = arith.constant 0 : index
    %3 = vector.load %arg1[%c0, %c0_1] : memref<8x32xf32, #tpu.memory_space<vmem>>, vector<8x32xf32>
    %c0_2 = arith.constant 0 : index
    %c0_3 = arith.constant 0 : index
    %4 = vector.load %arg2[%c0_2, %c0_3] : memref<8x1xi32, #tpu.memory_space<vmem>>, vector<8x1xi32>
    %cst = arith.constant dense<0xFF800000> : vector<8xf32>
    %5 = vector.multi_reduction <maximumf>, %3, %cst [1] : vector<8x32xf32> to vector<8xf32>
    %6 = vector.shape_cast %5 : vector<8xf32> to vector<8x1xf32>
    %7 = tpu.iota {dimensions = array<i32: 1>} : vector<8x32xi32>
    %8 = vector.broadcast %6 : vector<8x1xf32> to vector<8x32xf32>
    %9 = arith.cmpf oeq, %3, %8 : vector<8x32xf32>
    %c32_i32 = arith.constant 32 : i32
    %10 = vector.broadcast %c32_i32 : i32 to vector<8x32xi32>
    %11 = arith.select %9, %7, %10 : vector<8x32xi1>, vector<8x32xi32>
    %cst_4 = arith.constant dense<2147483647> : vector<8xi32>
    %12 = vector.multi_reduction <minsi>, %11, %cst_4 [1] : vector<8x32xi32> to vector<8xi32>
    %13 = vector.shape_cast %12 : vector<8xi32> to vector<8x1xi32>
    %14 = tpu.iota {dimensions = array<i32: 0>} : vector<8x1xi32>
    %c8_i32 = arith.constant 8 : i32
    %15 = arith.muli %arg0, %c8_i32 : i32
    %16 = vector.broadcast %15 : i32 to vector<8x1xi32>
    %17 = arith.addi %14, %16 : vector<8x1xi32>
    %c8_i32_5 = arith.constant 8 : i32
    %18 = vector.broadcast %c8_i32_5 : i32 to vector<8x1xi32>
    %19 = arith.cmpi slt, %17, %18 : vector<8x1xi32>
    %20 = arith.cmpi eq, %13, %4 : vector<8x1xi32>
    %21 = arith.andi %19, %20 : vector<8x1xi1>
    %c0_6 = arith.constant 0 : index
    %22 = memref.load %arg4[%c0_6] : memref<1xi32, #tpu.memory_space<smem>>
    %23 = arith.extui %21 : vector<8x1xi1> to vector<8x1xi32>
    %24 = vector.shape_cast %23 : vector<8x1xi32> to vector<1x8x1xi32>
    %cst_7 = arith.constant dense<0> : vector<1xi32>
    %25 = vector.multi_reduction <add>, %24, %cst_7 [1, 2] : vector<1x8x1xi32> to vector<1xi32>
    %26 = vector.shape_cast %25 : vector<1xi32> to vector<1x1x1xi32>
    %27 = vector.extract %26[0, 0, 0] : i32 from vector<1x1x1xi32>
    %28 = arith.addi %22, %27 : i32
    %c0_8 = arith.constant 0 : index
    %29 = memref.load %arg4[%c0_8] : memref<1xi32, #tpu.memory_space<smem>>
    memref.store %28, %arg4[%c0_8] : memref<1xi32, #tpu.memory_space<smem>>
    %c0_i32_9 = arith.constant 0 : i32
    %30 = arith.cmpi eq, %arg0, %c0_i32_9 : i32
    %31 = arith.extui %30 : i1 to i32
    %c0_i32_10 = arith.constant 0 : i32
    %32 = arith.cmpi ne, %31, %c0_i32_10 : i32
    scf.if %32 {
      %c0_11 = arith.constant 0 : index
      %33 = memref.load %arg4[%c0_11] : memref<1xi32, #tpu.memory_space<smem>>
      %34 = arith.sitofp %33 : i32 to f32
      %cst_12 = arith.constant 8.000000e+00 : f32
      %35 = arith.divf %34, %cst_12 : f32
      %c0_13 = arith.constant 0 : index
      %c0_14 = arith.constant 0 : index
      %36 = memref.load %arg3[%c0_13, %c0_14] : memref<1x1xf32, #tpu.memory_space<smem>>
      memref.store %35, %arg3[%c0_13, %c0_14] : memref<1x1xf32, #tpu.memory_space<smem>>
    } else {
    }
    return
  }
  func.func @transform_0(%arg0: i32) -> (i32, i32) {
    %c0_i32 = arith.constant 0 : i32
    %c0_i32_0 = arith.constant 0 : i32
    return %arg0, %c0_i32 : i32, i32
  }
  func.func @transform_1(%arg0: i32) -> (i32, i32) {
    %c0_i32 = arith.constant 0 : i32
    %c0_i32_0 = arith.constant 0 : i32
    return %arg0, %c0_i32 : i32, i32
  }
  func.func @transform_2(%arg0: i32) -> (i32, i32) {
    %c0_i32 = arith.constant 0 : i32
    %c0_i32_0 = arith.constant 0 : i32
    %c0_i32_1 = arith.constant 0 : i32
    return %c0_i32, %c0_i32_0 : i32, i32
  }
}

</mosaic_0001>

<llo_original>
// kernel: tpu_custom_call.1
$region0: #{tpu_custom_call.1}
  #allocation0 [shape = 'u32[]', space=smem, size = 0x4, offset = 0x4, fixed_abs, tag = 'smem constant byte address 0x4 - core index']
  #allocation1 [shape = 'u32[144,128]{1,0:T(1,128)}', space=vmem, size = 0x12000, scoped, tag = 'internal scratch']
  #allocation2 [shape = 's32[1]{0:T(128)}', space=smem, size = 0x200, scoped, tag = 'scratch operand']
  %s0 = inlined_call_operand.vmem [shape: f32[8,32], index: 0, kind: input, shape index: {}]
  %s1 = inlined_call_operand.vmem [shape: s32[8,1], index: 1, kind: input, shape index: {}]
  %s2 = inlined_call_operand.hbm [shape: f32[1,1], index: 2, kind: output, shape index: {}]
  %s3 = sld [smem:[#allocation0]]
  $region26: #{tpu_custom_call.1} parent=0
    _
  %s5 = ssub.s32 1, %s3
  %s6 = scalar_select 0, %s5, %s3
  $region1: #{tpu_custom_call.1} parent=0
    #allocation3 [shape = 'u8[512]{0}', space=smem, size = 0x200, scoped, tag = 'output window, operand 0, single buffered']
    #allocation4 [shape = 's32[1]{0}', space=sflag, size = 0x4, scoped, tag = 'scoped memory for tpu_custom_call.1']
    %7 = vsyncpa [#allocation4], 0
    // Predicated region
    $region2: #{tpu_custom_call.1} parent=1 // pred_check
      _
    $region3: #{tpu_custom_call.1} parent=1 // pred_check_branch
      %9 = sbr.rel (0) target = $region5
    $region4: #{tpu_custom_call.1} parent=1 // pred_region
      _
    $region5: #{tpu_custom_call.1} parent=1 // pred_fallthru
      _
    // Predicated region
    $region6: #{tpu_custom_call.1} parent=1 // pred_check
      _
    $region7: #{tpu_custom_call.1} parent=1 // pred_check_branch
      %11 = sbr.rel (0) target = $region9
    $region8: #{tpu_custom_call.1} parent=1 // pred_region
      _
    $region9: #{tpu_custom_call.1} parent=1 // pred_fallthru
      _
    %p12 = scmp.eq.s32.totalorder 0, 0
    // Predicated region
    $region10: #{tpu_custom_call.1} parent=1 // pred_check
      %p13 = pneg %p12
    $region11: #{tpu_custom_call.1} parent=1 // pred_check_branch
      %15 = sbr.rel (%p13) target = $region13
    $region12: #{tpu_custom_call.1} parent=1 // pred_region
      %s16 = scalar_lea.smem [#allocation2], 0
      %17 = sst [smem:[%s16]] 0
    $region13: #{tpu_custom_call.1} parent=1 // pred_fallthru
      _
    %v18 = vld [vmem:[%s0] sm:$0xff]
    %v19 = vld [vmem:[%s1] sm:$0xff]
    %vm20 = vcmask 261120
    %v21 = vsel %vm20, %v18, -inf
    %22 = vmax.xlane.f32.xlu0 %v21
    %v23 = vpop.xlane.xlu0 %22
    %v24 = vlaneseq
    %v25 = vand.u32 %v24, 127
    %vm26 = vcmp.eq.f32.partialorder %v18, %v23
    %v27 = vsel %vm26, %v25, 32
    %v28 = vsel %vm20, %v27, 2147483647
    %v29 = vand.u32 %v28, 65535
    %v30 = vshra.s32 %v28, 16
    %v31 = vcvt.s32.f32 %v29
    %v32 = vcvt.s32.f32 %v30
    %33 = vmin.xlane.f32.xlu0 %v32
    %v34 = vpop.xlane.xlu0 %33
    %vm35 = vcmp.eq.f32.partialorder %v32, %v34
    %v36 = vsel %vm35, %v31, inf
    %37 = vmin.xlane.f32.xlu0 %v36
    %v38 = vpop.xlane.xlu0 %37
    %v39 = vcvt.f32.s32 %v38
    %v40 = vcvt.f32.s32 %v34
    %v41 = vshll.u32 %v40, 16
    %v42 = vadd.s32 %v41, %v39
    %v43 = vlaneseq
    %v44 = vshrl.u32 %v43, 7
    %s45 = smul.u32 0, 8
    %v46 = vstv %s45
    %v47 = vadd.s32 %v44, %v46
    %vm48 = vcmp.lt.s32.totalorder %v47, 8
    %vm49 = vcmp.eq.s32.totalorder %v42, %v19
    %vm50 = vmand %vm48, %vm49
    %s51 = sld [smem:[#allocation2]]
    %v52 = vsel %vm50, 1, 0
    %vm53 = vcmask 7168
    %v54 = vsel %vm53, %v52, 0
    %v55 = vand.u32 %v54, 65535
    %v56 = vshrl.u32 %v54, 16
    %v57 = vcvt.s32.f32 %v55
    %v58 = vcvt.s32.f32 %v56
    %59 = vadd.xlane.f32.xlu0 %v57
    %v60 = vpop.xlane.xlu0 %59
    %61 = vadd.xlane.f32.xlu0 %v58
    %v62 = vpop.xlane.xlu0 %61
    %v63 = vcvt.f32.s32 %v60
    %v64 = vcvt.f32.s32 %v62
    %v65 = vshll.u32 %v64, 16
    %v66 = vadd.s32 %v65, %v63
    %v67 = vrot.slane %v66, 4
    %v68 = vadd.s32 %v66, %v67
    %v69 = vrot.slane %v68, 2
    %v70 = vadd.s32 %v68, %v69
    %v71 = vrot.slane %v70, 1
    %v72 = vadd.s32 %v70, %v71
    %s73 = vtos %v72
    %s74 = sadd.s32 %s51, %s73
    %s75 = scalar_lea.smem [#allocation2], 0
    %76 = sst [smem:[%s75]] %s74
    // Predicated region
    $region14: #{tpu_custom_call.1} parent=1 // pred_check
      %p77 = pneg %p12
    $region15: #{tpu_custom_call.1} parent=1 // pred_check_branch
      %79 = sbr.rel (%p77) target = $region17
    $region16: #{tpu_custom_call.1} parent=1 // pred_region
      %s80 = sld [smem:[#allocation2]]
      %s81 = scvt.s32.f32 %s80
      %v82 = vrcp.pop 8.0
      %s83 = vtos %v82
      %s84 = smul.f32 %s81, %s83
      %s85 = scalar_lea.smem [#allocation3], 0
      %86 = sst [smem:[%s85]] %s84
    $region17: #{tpu_custom_call.1} parent=1 // pred_fallthru
      _
    // Predicated region
    $region18: #{tpu_custom_call.1} parent=1 // pred_check
      _
    $region19: #{tpu_custom_call.1} parent=1 // pred_check_branch
      %88 = sbr.rel (0) target = $region21
    $region20: #{tpu_custom_call.1} parent=1 // pred_region
      %s90 = ssub.s32 16, 16
      %91 = vsyncadd [#allocation4], %s90
      %94 = dma.smem_to_hbm [#allocation3], 16, %s2, [#allocation4]
    $region21: #{tpu_custom_call.1} parent=1 // pred_fallthru
      _
    // Predicated region
    $region22: #{tpu_custom_call.1} parent=1 // pred_check
      _
    $region23: #{tpu_custom_call.1} parent=1 // pred_check_branch
      %96 = sbr.rel (0) target = $region25
    $region24: #{tpu_custom_call.1} parent=1 // pred_region
      %97 = dma.done [#allocation4], 16
    $region25: #{tpu_custom_call.1} parent=1 // pred_fallthru
      _
    %98 = sfence
    %99 = vsyncpa [#allocation4], 1

</llo_original>
